<compile_context>
chip_gen: v6e
topology: v6e:2x2x1
jax: 0.10.0
libtpu: 0.0.40
codegen_flags: <defaults>
</compile_context>

<pallas_src>
import jax
import jax.numpy as jnp
from jax.experimental import pallas as pl
from jax.experimental.pallas import tpu as pltpu


def _round_up(n, m):
    return ((n + m - 1) // m) * m


# ---------------------------------------------------------------------------
# Pallas kernel: full forward pass (2-layer ReLU MLP base + fused, padded heads)
# ---------------------------------------------------------------------------
def actor_critic_kernel(x_ref, w1_ref, b1_ref, w2_ref, b2_ref, wh_ref, bh_ref,
                        lo_ref, hi_ref, out_ref):
    # --- input sanitation (mirrors torch: drop non-finite, clamp to ±10) ---
    x = x_ref[...]
    x = jnp.where(jnp.isfinite(x), x, jnp.zeros_like(x))
    x = jnp.clip(x, -10.0, 10.0).astype(jnp.bfloat16)
    # TODO(synk): reference adds x + randn_like(x)*1e-6 exploration noise and
    # replaces non-finite entries with randn*0.01; omitted to keep the kernel
    # deterministic (would use pltpu.prng_seed / pltpu.prng_random_bits).

    # --- shared base: Linear -> ReLU -> Linear -> ReLU (bf16 MXU, f32 acc) ---
    h = jnp.dot(x, w1_ref[...], preferred_element_type=jnp.float32) + b1_ref[...]
    h = jnp.maximum(h, 0.0).astype(jnp.bfloat16)       # bf16 right away: halves
    h = jnp.dot(h, w2_ref[...], preferred_element_type=jnp.float32) + b2_ref[...]
    h = jnp.maximum(h, 0.0).astype(jnp.bfloat16)       # the [tb,H] temp traffic
    # x is finite & clipped and the weights are finite, so h / logits / value
    # cannot be non-finite -> the torch NaN-protection branches are no-ops here.

    # --- fused, lane-dense (padded to 128 cols) policy + value heads ---
    out = jnp.dot(h, wh_ref[...], preferred_element_type=jnp.float32) + bh_ref[...]
    # per-column clip ranges: cols [0:A] -> ±5 (logits), col A -> ±10 (value)
    out_ref[...] = jnp.minimum(jnp.maximum(out, lo_ref[...]), hi_ref[...])


# ---------------------------------------------------------------------------
# Tiling / VMEM heuristics
# ---------------------------------------------------------------------------
def _row_vmem_bytes(din, hidden, wout):
    # x double-buffered (input dtype <= f32) + out double-buffered f32
    # + f32 h accumulator + bf16 h operand + f32 fused-head accumulator
    # + bf16 x operand.
    return (2 * din * 4 + 2 * wout * 4 + hidden * (4 + 2) + wout * 4 + din * 2)


def _choose_tiling(batch, din, hidden, wout, batch_tile, weight_bytes,
                   vmem_budget_bytes):
    row_bytes = _row_vmem_bytes(din, hidden, wout)
    avail = max(vmem_budget_bytes - weight_bytes, 8 * row_bytes)
    vmem_cap = max(8, (avail // row_bytes) // 8 * 8)
    tb_target = max(8, min(batch_tile, vmem_cap))

    num_steps = -(-batch // tb_target)           # ceil
    if batch > 16:
        num_steps = max(num_steps, 2)            # >=2 steps -> both v7x TCs
    num_steps = max(num_steps, 1)
    # balance rows across steps so ragged batches don't waste a near-empty tile
    tb = _round_up(-(-batch // num_steps), 8)
    return tb, num_steps, row_bytes


# ---------------------------------------------------------------------------
# Wrapper
# ---------------------------------------------------------------------------
def actor_critic_forward(x, params, *, batch_tile=2048,
                         vmem_budget_bytes=40 * 1024 * 1024):
    """x: [batch, input_dim] (f32 or bf16). Returns (logits [B, A], value [B, 1])."""
    B, Din = x.shape
    w1, b1, w2, b2 = params["w1"], params["b1"], params["w2"], params["b2"]
    wh, bh, lo, hi = params["wh"], params["bh"], params["lo"], params["hi"]
    H = w1.shape[1]
    Wout = wh.shape[1]            # lane-dense padded head width (multiple of 128)
    A = params["action_dim"]

    weight_bytes = sum(int(a.size) * a.dtype.itemsize
                       for a in (w1, b1, w2, b2, wh, bh, lo, hi))
    tb, num_steps, row_bytes = _choose_tiling(
        B, Din, H, Wout, batch_tile, weight_bytes, vmem_budget_bytes)

    b_pad = tb * num_steps
    if b_pad != B:
        x = jnp.pad(x, ((0, b_pad - B), (0, 0)))

    # Explicit scoped-VMEM limit (v5e default is only 16 MiB); keep headroom but
    # stay under v7x's 64 MiB physical VMEM.
    vmem_limit = int(min(max(weight_bytes + tb * row_bytes + (4 << 20), 16 << 20),
                         56 << 20))

    resident = dict(pipeline_mode=pl.Buffered(buffer_count=1))  # constant index_map
    out = pl.pallas_call(
        actor_critic_kernel,
        out_shape=jax.ShapeDtypeStruct((b_pad, Wout), jnp.float32),
        grid=(num_steps,),
        in_specs=[
            pl.BlockSpec((tb, Din), lambda i: (i, 0)),              # x: batch-tiled
            pl.BlockSpec((Din, H), lambda i: (0, 0), **resident),   # w1 (resident)
            pl.BlockSpec((1, H), lambda i: (0, 0), **resident),     # b1
            pl.BlockSpec((H, H), lambda i: (0, 0), **resident),     # w2
            pl.BlockSpec((1, H), lambda i: (0, 0), **resident),     # b2
            pl.BlockSpec((H, Wout), lambda i: (0, 0), **resident),  # fused head W
            pl.BlockSpec((1, Wout), lambda i: (0, 0), **resident),  # fused head b
            pl.BlockSpec((1, Wout), lambda i: (0, 0), **resident),  # clip lo
            pl.BlockSpec((1, Wout), lambda i: (0, 0), **resident),  # clip hi
        ],
        out_specs=pl.BlockSpec((tb, Wout), lambda i: (i, 0)),
        compiler_params=pltpu.CompilerParams(
            dimension_semantics=("parallel",),
            vmem_limit_bytes=vmem_limit),
    )(x, w1, b1, w2, b2, wh, bh, lo, hi)

    logits = out[:B, :A]
    value = out[:B, A:A + 1]       # value column is at index A of the padded head
    return logits, value


# ---------------------------------------------------------------------------
# Deterministic parameter init (mimics nn.init.orthogonal_(gain=0.01), zero bias)
# ---------------------------------------------------------------------------
def orthogonal_init(key, out_features, in_features, gain=0.01):
    rows, cols = out_features, in_features
    flat_shape = (rows, cols) if rows >= cols else (cols, rows)
    a = jax.random.normal(key, flat_shape, dtype=jnp.float32)
    q, r = jnp.linalg.qr(a)
    q = q * jnp.sign(jnp.diag(r))          # make the decomposition unique
    if rows < cols:
        q = q.T
    return gain * q[:rows, :cols]          # torch layout: [out_features, in_features]


def make_params(key, input_dim, hidden_dim, action_dim):
    k1, k2, k3, k4 = jax.random.split(key, 4)
    w1 = orthogonal_init(k1, hidden_dim, input_dim)    # base[0]
    w2 = orthogonal_init(k2, hidden_dim, hidden_dim)   # base[2]
    wp = orthogonal_init(k3, action_dim, hidden_dim)   # policy_head
    wv = orthogonal_init(k4, 1, hidden_dim)            # value_head

    # Fused heads padded to a lane-dense width (multiple of 128). Layout:
    # rows [0:A] = policy head, row A = value head, rest = zero padding.
    head_width = _round_up(action_dim + 1, 128)
    wh = jnp.zeros((head_width, hidden_dim), jnp.float32)
    wh = wh.at[:action_dim].set(wp).at[action_dim].set(wv[0])

    col = jnp.arange(head_width)
    lo = jnp.where(col < action_dim, -5.0, -10.0).astype(jnp.float32)[None, :]
    hi = jnp.where(col < action_dim, 5.0, 10.0).astype(jnp.float32)[None, :]

    return {
        # pre-transposed to [in, out]; weights bf16 for the MXU, biases f32
        "w1": w1.T.astype(jnp.bfloat16),
        "b1": jnp.zeros((1, hidden_dim), jnp.float32),
        "w2": w2.T.astype(jnp.bfloat16),
        "b2": jnp.zeros((1, hidden_dim), jnp.float32),
        "wh": wh.T.astype(jnp.bfloat16),                 # [hidden, head_width]
        "bh": jnp.zeros((1, head_width), jnp.float32),
        "lo": lo,
        "hi": hi,
        "action_dim": action_dim,                        # static python int
    }


if __name__ == "__main__":
    key = jax.random.PRNGKey(0)
    k_x, k_p = jax.random.split(key)

    batch, input_dim, hidden_dim, action_dim = 8, 16, 32, 4
    x = jax.random.normal(k_x, (batch, input_dim), dtype=jnp.float32) * 3.0
    params = make_params(k_p, input_dim, hidden_dim, action_dim)

    logits, value = actor_critic_forward(x, params)
    jax.block_until_ready((logits, value))

    # Pure-JAX reference with the same bf16-operand / f32-accumulate numerics.
    xc = jnp.clip(x, -10.0, 10.0).astype(jnp.bfloat16)
    h = jnp.maximum(jnp.dot(xc, params["w1"],
                            preferred_element_type=jnp.float32) + params["b1"], 0.0)
    h = h.astype(jnp.bfloat16)
    h = jnp.maximum(jnp.dot(h, params["w2"],
                            preferred_element_type=jnp.float32) + params["b2"], 0.0)
    h = h.astype(jnp.bfloat16)
    head = jnp.dot(h, params["wh"], preferred_element_type=jnp.float32) + params["bh"]
    ref_logits = jnp.clip(head[:, :action_dim], -5.0, 5.0)
    ref_value = jnp.clip(head[:, action_dim:action_dim + 1], -10.0, 10.0)

    assert logits.shape == (batch, action_dim) and value.shape == (batch, 1)
    assert jnp.allclose(logits, ref_logits, atol=1e-4, rtol=1e-3)
    assert jnp.allclose(value, ref_value, atol=1e-4, rtol=1e-3)

    print("KERNEL_OK")
</pallas_src>

<mosaic_0001>
module attributes {stable_mosaic.version = 11 : i64} {
  func.func @actor_critic_kernel(%arg0: i32, %arg1: memref<8x16xf32, #tpu.memory_space<vmem>>, %arg2: memref<16x32xbf16, #tpu.memory_space<vmem>>, %arg3: memref<1x32xf32, #tpu.memory_space<vmem>>, %arg4: memref<32x32xbf16, #tpu.memory_space<vmem>>, %arg5: memref<1x32xf32, #tpu.memory_space<vmem>>, %arg6: memref<32x128xbf16, #tpu.memory_space<vmem>>, %arg7: memref<1x128xf32, #tpu.memory_space<vmem>>, %arg8: memref<1x128xf32, #tpu.memory_space<vmem>>, %arg9: memref<1x128xf32, #tpu.memory_space<vmem>>, %arg10: memref<8x128xf32, #tpu.memory_space<vmem>>) attributes {dimension_semantics = [#tpu.dimension_semantics<parallel>], iteration_bounds = array<i64: 1>, scalar_prefetch = 0 : i64, scratch_operands = 0 : i64, tpu.core_type = #tpu.core_type<tc>, window_params = [{transform_indices = @transform_0, window_bounds = array<i64: 8, 16>}, {pipeline_mode = #tpu.pipeline_mode<synchronous>, transform_indices = @transform_1, window_bounds = array<i64: 16, 32>}, {pipeline_mode = #tpu.pipeline_mode<synchronous>, transform_indices = @transform_2, window_bounds = array<i64: 1, 32>}, {pipeline_mode = #tpu.pipeline_mode<synchronous>, transform_indices = @transform_3, window_bounds = array<i64: 32, 32>}, {pipeline_mode = #tpu.pipeline_mode<synchronous>, transform_indices = @transform_4, window_bounds = array<i64: 1, 32>}, {pipeline_mode = #tpu.pipeline_mode<synchronous>, transform_indices = @transform_5, window_bounds = array<i64: 32, 128>}, {pipeline_mode = #tpu.pipeline_mode<synchronous>, transform_indices = @transform_6, window_bounds = array<i64: 1, 128>}, {pipeline_mode = #tpu.pipeline_mode<synchronous>, transform_indices = @transform_7, window_bounds = array<i64: 1, 128>}, {pipeline_mode = #tpu.pipeline_mode<synchronous>, transform_indices = @transform_8, window_bounds = array<i64: 1, 128>}, {transform_indices = @transform_9, window_bounds = array<i64: 8, 128>}]} {
    %c0 = arith.constant 0 : index
    %c0_0 = arith.constant 0 : index
    %0 = vector.load %arg1[%c0, %c0_0] : memref<8x16xf32, #tpu.memory_space<vmem>>, vector<8x16xf32>
    %1 = tpu.weird %0 : vector<8x16xf32> -> vector<8x16xi1>
    %cst = arith.constant dense<true> : vector<8x16xi1>
    %2 = arith.xori %1, %cst : vector<8x16xi1>
    %cst_1 = arith.constant 0.000000e+00 : f32
    %3 = vector.broadcast %cst_1 : f32 to vector<8x16xf32>
    %4 = arith.select %2, %0, %3 : vector<8x16xi1>, vector<8x16xf32>
    %cst_2 = arith.constant -1.000000e+01 : f32
    %cst_3 = arith.constant 1.000000e+01 : f32
    %5 = vector.broadcast %cst_2 : f32 to vector<8x16xf32>
    %6 = arith.maximumf %5, %4 : vector<8x16xf32>
    %7 = vector.broadcast %cst_3 : f32 to vector<8x16xf32>
    %8 = arith.minimumf %7, %6 : vector<8x16xf32>
    %9 = arith.truncf %8 : vector<8x16xf32> to vector<8x16xbf16>
    %c0_4 = arith.constant 0 : index
    %c0_5 = arith.constant 0 : index
    %10 = vector.load %arg2[%c0_4, %c0_5] : memref<16x32xbf16, #tpu.memory_space<vmem>>, vector<16x32xbf16>
    %cst_6 = arith.constant dense<0.000000e+00> : vector<8x32xf32>
    %11 = tpu.matmul %9, %10, %cst_6 {dimension_numbers = #tpu.dot_dimension_numbers<[1], [0], [0], [1], [0, 0, 1, 1], [], []>} : vector<8x16xbf16>, vector<16x32xbf16>, vector<8x32xf32> -> vector<8x32xf32>
    %c0_7 = arith.constant 0 : index
    %c0_8 = arith.constant 0 : index
    %12 = vector.load %arg3[%c0_7, %c0_8] : memref<1x32xf32, #tpu.memory_space<vmem>>, vector<1x32xf32>
    %13 = vector.broadcast %12 : vector<1x32xf32> to vector<8x32xf32>
    %14 = arith.addf %11, %13 : vector<8x32xf32>
    %cst_9 = arith.constant 0.000000e+00 : f32
    %15 = vector.broadcast %cst_9 : f32 to vector<8x32xf32>
    %16 = arith.maximumf %14, %15 : vector<8x32xf32>
    %17 = arith.truncf %16 : vector<8x32xf32> to vector<8x32xbf16>
    %c0_10 = arith.constant 0 : index
    %c0_11 = arith.constant 0 : index
    %18 = vector.load %arg4[%c0_10, %c0_11] : memref<32x32xbf16, #tpu.memory_space<vmem>>, vector<32x32xbf16>
    %cst_12 = arith.constant dense<0.000000e+00> : vector<8x32xf32>
    %19 = tpu.matmul %17, %18, %cst_12 {dimension_numbers = #tpu.dot_dimension_numbers<[1], [0], [0], [1], [0, 0, 1, 1], [], []>} : vector<8x32xbf16>, vector<32x32xbf16>, vector<8x32xf32> -> vector<8x32xf32>
    %c0_13 = arith.constant 0 : index
    %c0_14 = arith.constant 0 : index
    %20 = vector.load %arg5[%c0_13, %c0_14] : memref<1x32xf32, #tpu.memory_space<vmem>>, vector<1x32xf32>
    %21 = vector.broadcast %20 : vector<1x32xf32> to vector<8x32xf32>
    %22 = arith.addf %19, %21 : vector<8x32xf32>
    %cst_15 = arith.constant 0.000000e+00 : f32
    %23 = vector.broadcast %cst_15 : f32 to vector<8x32xf32>
    %24 = arith.maximumf %22, %23 : vector<8x32xf32>
    %25 = arith.truncf %24 : vector<8x32xf32> to vector<8x32xbf16>
    %c0_16 = arith.constant 0 : index
    %c0_17 = arith.constant 0 : index
    %26 = vector.load %arg6[%c0_16, %c0_17] : memref<32x128xbf16, #tpu.memory_space<vmem>>, vector<32x128xbf16>
    %cst_18 = arith.constant dense<0.000000e+00> : vector<8x128xf32>
    %27 = tpu.matmul %25, %26, %cst_18 {dimension_numbers = #tpu.dot_dimension_numbers<[1], [0], [0], [1], [0, 0, 1, 1], [], []>} : vector<8x32xbf16>, vector<32x128xbf16>, vector<8x128xf32> -> vector<8x128xf32>
    %c0_19 = arith.constant 0 : index
    %c0_20 = arith.constant 0 : index
    %28 = vector.load %arg7[%c0_19, %c0_20] : memref<1x128xf32, #tpu.memory_space<vmem>>, vector<1x128xf32>
    %29 = vector.broadcast %28 : vector<1x128xf32> to vector<8x128xf32>
    %30 = arith.addf %27, %29 : vector<8x128xf32>
    %c0_21 = arith.constant 0 : index
    %c0_22 = arith.constant 0 : index
    %31 = vector.load %arg8[%c0_21, %c0_22] : memref<1x128xf32, #tpu.memory_space<vmem>>, vector<1x128xf32>
    %32 = vector.broadcast %31 : vector<1x128xf32> to vector<8x128xf32>
    %33 = arith.maximumf %30, %32 : vector<8x128xf32>
    %c0_23 = arith.constant 0 : index
    %c0_24 = arith.constant 0 : index
    %34 = vector.load %arg9[%c0_23, %c0_24] : memref<1x128xf32, #tpu.memory_space<vmem>>, vector<1x128xf32>
    %35 = vector.broadcast %34 : vector<1x128xf32> to vector<8x128xf32>
    %36 = arith.minimumf %33, %35 : vector<8x128xf32>
    %c0_25 = arith.constant 0 : index
    %c0_26 = arith.constant 0 : index
    %37 = vector.load %arg10[%c0_25, %c0_26] : memref<8x128xf32, #tpu.memory_space<vmem>>, vector<8x128xf32>
    tpu.vector_store %arg10[%c0_25, %c0_26], %36 {strides = array<i32>} : memref<8x128xf32, #tpu.memory_space<vmem>>, vector<8x128xf32>,
    return
  }
  func.func @transform_0(%arg0: i32) -> (i32, i32) {
    %c0_i32 = arith.constant 0 : i32
    %c0_i32_0 = arith.constant 0 : i32
    return %arg0, %c0_i32 : i32, i32
  }
  func.func @transform_1(%arg0: i32) -> (i32, i32) {
    %c0_i32 = arith.constant 0 : i32
    %c0_i32_0 = arith.constant 0 : i32
    %c0_i32_1 = arith.constant 0 : i32
    return %c0_i32, %c0_i32_0 : i32, i32
  }
  func.func @transform_2(%arg0: i32) -> (i32, i32) {
    %c0_i32 = arith.constant 0 : i32
    %c0_i32_0 = arith.constant 0 : i32
    %c0_i32_1 = arith.constant 0 : i32
    return %c0_i32, %c0_i32_0 : i32, i32
  }
  func.func @transform_3(%arg0: i32) -> (i32, i32) {
    %c0_i32 = arith.constant 0 : i32
    %c0_i32_0 = arith.constant 0 : i32
    %c0_i32_1 = arith.constant 0 : i32
    return %c0_i32, %c0_i32_0 : i32, i32
  }
  func.func @transform_4(%arg0: i32) -> (i32, i32) {
    %c0_i32 = arith.constant 0 : i32
    %c0_i32_0 = arith.constant 0 : i32
    %c0_i32_1 = arith.constant 0 : i32
    return %c0_i32, %c0_i32_0 : i32, i32
  }
  func.func @transform_5(%arg0: i32) -> (i32, i32) {
    %c0_i32 = arith.constant 0 : i32
    %c0_i32_0 = arith.constant 0 : i32
    %c0_i32_1 = arith.constant 0 : i32
    return %c0_i32, %c0_i32_0 : i32, i32
  }
  func.func @transform_6(%arg0: i32) -> (i32, i32) {
    %c0_i32 = arith.constant 0 : i32
    %c0_i32_0 = arith.constant 0 : i32
    %c0_i32_1 = arith.constant 0 : i32
    return %c0_i32, %c0_i32_0 : i32, i32
  }
  func.func @transform_7(%arg0: i32) -> (i32, i32) {
    %c0_i32 = arith.constant 0 : i32
    %c0_i32_0 = arith.constant 0 : i32
    %c0_i32_1 = arith.constant 0 : i32
    return %c0_i32, %c0_i32_0 : i32, i32
  }
  func.func @transform_8(%arg0: i32) -> (i32, i32) {
    %c0_i32 = arith.constant 0 : i32
    %c0_i32_0 = arith.constant 0 : i32
    %c0_i32_1 = arith.constant 0 : i32
    return %c0_i32, %c0_i32_0 : i32, i32
  }
  func.func @transform_9(%arg0: i32) -> (i32, i32) {
    %c0_i32 = arith.constant 0 : i32
    %c0_i32_0 = arith.constant 0 : i32
    return %arg0, %c0_i32 : i32, i32
  }
}

</mosaic_0001>

<llo_original>
// kernel: tpu_custom_call.1
$region0: #{tpu_custom_call.1}
  #allocation0 [shape = 'u32[]', space=smem, size = 0x4, offset = 0x4, fixed_abs, tag = 'smem constant byte address 0x4 - core index']
  #allocation1 [shape = 'u32[144,128]{1,0:T(1,128)}', space=vmem, size = 0x12000, scoped, tag = 'internal scratch']
  %s0 = inlined_call_operand.hbm [shape: f32[8,16], index: 0, kind: input, shape index: {}]
  %s1 = inlined_call_operand.hbm [shape: bf16[16,32], index: 1, kind: input, shape index: {}]
  %s2 = inlined_call_operand.vmem [shape: f32[1,32], index: 2, kind: input, shape index: {}]
  %s3 = inlined_call_operand.hbm [shape: bf16[32,32], index: 3, kind: input, shape index: {}]
  %s4 = inlined_call_operand.vmem [shape: f32[1,32], index: 4, kind: input, shape index: {}]
  %s5 = inlined_call_operand.hbm [shape: bf16[32,128], index: 5, kind: input, shape index: {}]
  %s6 = inlined_call_operand.vmem [shape: f32[1,128], index: 6, kind: input, shape index: {}]
  %s7 = inlined_call_operand.vmem [shape: f32[1,128], index: 7, kind: input, shape index: {}]
  %s8 = inlined_call_operand.vmem [shape: f32[1,128], index: 8, kind: input, shape index: {}]
  %s9 = inlined_call_operand.hbm [shape: f32[8,128], index: 9, kind: output, shape index: {}]
  %s10 = sld [smem:[#allocation0]]
  $region62: #{tpu_custom_call.1} parent=0
    _
  %s12 = ssub.s32 1, %s10
  %s13 = scalar_select 0, %s12, %s10
  $region1: #{tpu_custom_call.1} parent=0
    #allocation2 [shape = 'u8[4096]{0}', space=vmem, size = 0x1000, scoped, tag = 'input window, operand 0, single buffered']
    #allocation3 [shape = 's32[1]{0}', space=sflag, size = 0x4, scoped, tag = 'scoped memory for tpu_custom_call.1']
    #allocation4 [shape = 's32[1]{0}', space=sflag, size = 0x4, scoped, tag = 'scoped memory for tpu_custom_call.1']
    #allocation5 [shape = 'u8[4096]{0}', space=vmem, size = 0x1000, scoped, tag = 'input window, operand 1, single buffered']
    #allocation6 [shape = 's32[1]{0}', space=sflag, size = 0x4, scoped, tag = 'scoped memory for tpu_custom_call.1']
    #allocation7 [shape = 'u8[8192]{0}', space=vmem, size = 0x2000, scoped, tag = 'input window, operand 3, single buffered']
    #allocation8 [shape = 'u8[8192]{0}', space=vmem, size = 0x2000, scoped, tag = 'input window, operand 5, single buffered']
    #allocation9 [shape = 's32[1]{0}', space=sflag, size = 0x4, scoped, tag = 'scoped memory for tpu_custom_call.1']
    #allocation10 [shape = 'u8[4096]{0}', space=vmem, size = 0x1000, scoped, tag = 'output window, operand 0, single buffered']
    %14 = vsyncpa [#allocation3], 0
    %15 = vsyncpa [#allocation6], 0
    %16 = vsyncpa [#allocation9], 0
    %17 = vsyncpa [#allocation4], 0
    // Predicated region
    $region2: #{tpu_custom_call.1} parent=1 // pred_check
      _
    $region3: #{tpu_custom_call.1} parent=1 // pred_check_branch
      %19 = sbr.rel (0) target = $region5
    $region4: #{tpu_custom_call.1} parent=1 // pred_region
      %s21 = ssub.s32 128, 128
      %22 = vsyncadd [#allocation3], %s21
      %s24 = sshll.u32 [#allocation2], 4
      %s25 = int_to_ptr.vmem [resolvable:$true] %s24
      %27 = dma.hbm_to_vmem [thread:$0]  %s0, 128, %s25, [#allocation3]
    $region5: #{tpu_custom_call.1} parent=1 // pred_fallthru
      _
    // Predicated region
    $region6: #{tpu_custom_call.1} parent=1 // pred_check
      _
    $region7: #{tpu_custom_call.1} parent=1 // pred_check_branch
      %29 = sbr.rel (0) target = $region9
    $region8: #{tpu_custom_call.1} parent=1 // pred_region
      %s31 = ssub.s32 128, 128
      %32 = vsyncadd [#allocation6], %s31
      %s33 = sshll.u32 [#allocation5], 4
      %s34 = int_to_ptr.vmem [resolvable:$true] %s33
      %39 = dma.hbm_to_vmem [thread:$0]  %s1, 128, %s34, [#allocation6], 64, 64, 4
    $region9: #{tpu_custom_call.1} parent=1 // pred_fallthru
      _
    // Predicated region
    $region10: #{tpu_custom_call.1} parent=1 // pred_check
      _
    $region11: #{tpu_custom_call.1} parent=1 // pred_check_branch
      %41 = sbr.rel (0) target = $region13
    $region12: #{tpu_custom_call.1} parent=1 // pred_region
      _
    $region13: #{tpu_custom_call.1} parent=1 // pred_fallthru
      _
    // Predicated region
    $region14: #{tpu_custom_call.1} parent=1 // pred_check
      _
    $region15: #{tpu_custom_call.1} parent=1 // pred_check_branch
      %43 = sbr.rel (0) target = $region17
    $region16: #{tpu_custom_call.1} parent=1 // pred_region
      %s45 = ssub.s32 256, 256
      %46 = vsyncadd [#allocation6], %s45
      %s47 = sshll.u32 [#allocation7], 4
      %s48 = int_to_ptr.vmem [resolvable:$true] %s47
      %53 = dma.hbm_to_vmem [thread:$0]  %s3, 256, %s48, [#allocation6], 64, 64, 4
    $region17: #{tpu_custom_call.1} parent=1 // pred_fallthru
      _
    // Predicated region
    $region18: #{tpu_custom_call.1} parent=1 // pred_check
      _
    $region19: #{tpu_custom_call.1} parent=1 // pred_check_branch
      %55 = sbr.rel (0) target = $region21
    $region20: #{tpu_custom_call.1} parent=1 // pred_region
      _
    $region21: #{tpu_custom_call.1} parent=1 // pred_fallthru
      _
    // Predicated region
    $region22: #{tpu_custom_call.1} parent=1 // pred_check
      _
    $region23: #{tpu_custom_call.1} parent=1 // pred_check_branch
      %57 = sbr.rel (0) target = $region25
    $region24: #{tpu_custom_call.1} parent=1 // pred_region
      %s59 = ssub.s32 256, 256
      %60 = vsyncadd [#allocation9], %s59
      %s61 = sshll.u32 [#allocation8], 4
      %s62 = int_to_ptr.vmem [resolvable:$true] %s61
      %67 = dma.hbm_to_vmem [thread:$0]  %s5, 256, %s62, [#allocation9], 64, 64, 4
    $region25: #{tpu_custom_call.1} parent=1 // pred_fallthru
      _
    // Predicated region
    $region26: #{tpu_custom_call.1} parent=1 // pred_check
      _
    $region27: #{tpu_custom_call.1} parent=1 // pred_check_branch
      %69 = sbr.rel (0) target = $region29
    $region28: #{tpu_custom_call.1} parent=1 // pred_region
      _
    $region29: #{tpu_custom_call.1} parent=1 // pred_fallthru
      _
    // Predicated region
    $region30: #{tpu_custom_call.1} parent=1 // pred_check
      _
    $region31: #{tpu_custom_call.1} parent=1 // pred_check_branch
      %71 = sbr.rel (0) target = $region33
    $region32: #{tpu_custom_call.1} parent=1 // pred_region
      _
    $region33: #{tpu_custom_call.1} parent=1 // pred_fallthru
      _
    // Predicated region
    $region34: #{tpu_custom_call.1} parent=1 // pred_check
      _
    $region35: #{tpu_custom_call.1} parent=1 // pred_check_branch
      %73 = sbr.rel (0) target = $region37
    $region36: #{tpu_custom_call.1} parent=1 // pred_region
      _
    $region37: #{tpu_custom_call.1} parent=1 // pred_fallthru
      _
    // Predicated region
    $region38: #{tpu_custom_call.1} parent=1 // pred_check
      _
    $region39: #{tpu_custom_call.1} parent=1 // pred_check_branch
      %75 = sbr.rel (0) target = $region41
    $region40: #{tpu_custom_call.1} parent=1 // pred_region
      %76 = dma.done [#allocation3], 128
    $region41: #{tpu_custom_call.1} parent=1 // pred_fallthru
      _
    // Predicated region
    $region42: #{tpu_custom_call.1} parent=1 // pred_check
      _
    $region43: #{tpu_custom_call.1} parent=1 // pred_check_branch
      %78 = sbr.rel (0) target = $region45
    $region44: #{tpu_custom_call.1} parent=1 // pred_region
      %79 = dma.done [#allocation6], 128
    $region45: #{tpu_custom_call.1} parent=1 // pred_fallthru
      _
    // Predicated region
    $region46: #{tpu_custom_call.1} parent=1 // pred_check
      _
    $region47: #{tpu_custom_call.1} parent=1 // pred_check_branch
      %81 = sbr.rel (0) target = $region49
    $region48: #{tpu_custom_call.1} parent=1 // pred_region
      %82 = dma.done [#allocation6], 256
    $region49: #{tpu_custom_call.1} parent=1 // pred_fallthru
      _
    // Predicated region
    $region50: #{tpu_custom_call.1} parent=1 // pred_check
      _
    $region51: #{tpu_custom_call.1} parent=1 // pred_check_branch
      %84 = sbr.rel (0) target = $region53
    $region52: #{tpu_custom_call.1} parent=1 // pred_region
      %85 = dma.done [#allocation9], 256
    $region53: #{tpu_custom_call.1} parent=1 // pred_fallthru
      _
    %v87 = vld [vmem:[#allocation2] sm:$0xff]
    %vm88 = vweird.f32 %v87
    %vm89 = vmxor %vm88, 1
    %v90 = vsel %vm89, %v87, 0.0
    %v91 = vmax.f32 %v90, -10.0
    %v92 = vmin.f32 %v91, 10.0
    %v93 = vpack.c.bf16 %v92, %v92
    %v94 = vld [vmem:[#allocation5] sm:$0xf]
    %v95 = vld [vmem:[#allocation5 + $0x4] sm:$0xf]
    %v96 = vld [vmem:[%s2] sm:$0x1]
    %v98 = vlaneseq
    %v99 = vshrl.u32 %v98, 7
    %v100 = vsub.s32 0, %v99
    %v101 = vrot.slane %v96, %v100
    %v105 = vunpack.c.l.b16 %v94
    %v106 = vunpack.c.l.b16 %v95
    %v107 = vpack.c.b16 %v106, %v105
    %vm109 = vcmask 130048
    %v111 = vsel %vm109, %v93, 0
    %113 = vmatprep.subr.bf16.mxu0 0
    %114 = vmatpush1.bf16.msra.mxu0 0
    %115 = vmatprep.subr.bf16.mxu0 0
    %116 = vmatpush1.bf16.msra.mxu0 0
    %117 = vmatprep.subr.bf16.mxu0 0
    %118 = vmatpush1.bf16.msra.mxu0 0
    %119 = vmatprep.subr.bf16.mxu0 0
    %120 = vmatpush1.bf16.msra.mxu0 0
    %121 = vmatprep.subr.bf16.mxu0 0
    %122 = vmatpush1.bf16.msra.mxu0 0
    %123 = vmatprep.subr.bf16.mxu0 0
    %124 = vmatpush1.bf16.msra.mxu0 0
    %125 = vmatprep.subr.bf16.mxu0 0
    %126 = vmatpush1.bf16.msra.mxu0 0
    %127 = vmatprep.subr.bf16.mxu0 0
    %128 = vmatpush1.bf16.msra.mxu0 %v107
    %129 = vmatprep.subr.bf16.mxu0 0
    %130 = vmatpush2.bf16.msra.mxu0 0
    %131 = vmatprep.subr.bf16.mxu0 0
    %132 = vmatpush2.bf16.msra.mxu0 0
    %133 = vmatprep.subr.bf16.mxu0 0
    %134 = vmatpush2.bf16.msra.mxu0 0
    %135 = vmatprep.subr.bf16.mxu0 0
    %136 = vmatpush2.bf16.msra.mxu0 0
    %137 = vmatprep.subr.bf16.mxu0 0
    %138 = vmatpush2.bf16.msra.mxu0 0
    %139 = vmatprep.subr.bf16.mxu0 0
    %140 = vmatpush2.bf16.msra.mxu0 0
    %141 = vmatprep.subr.bf16.mxu0 0
    %142 = vmatpush2.bf16.msra.mxu0 0
    %143 = vmatprep.subr.bf16.mxu0 0
    %144 = vmatpush2.bf16.msra.mxu0 0
    %145 = vmatprep.mubr.bf16.mxu0 0
    %146 = vmatmul.mubr.bf16.gmra.mxu0 %v111
    %v147 = vpop.f32.mrf.mxu0
    %v148 = vadd.f32 %v101, %v147
    %v149 = vpop.f32.mrf.mxu0
    %v150 = vpop.f32.mrf.mxu0
    %v151 = vpop.f32.mrf.mxu0
    %152 = vdwg.mxu0
    %v153 = vmax.f32 %v148, 0.0
    %v154 = vpack.c.bf16 %v153, %v153
    %v155 = vld [vmem:[#allocation7] sm:$0xf]
    %v156 = vld [vmem:[#allocation7 + $0x4] sm:$0xf]
    %v157 = vld [vmem:[#allocation7 + $0x8] sm:$0xf]
    %v158 = vld [vmem:[#allocation7 + $0xc] sm:$0xf]
    %v159 = vld [vmem:[%s4] sm:$0x1]
    %v161 = vlaneseq
    %v162 = vshrl.u32 %v161, 7
    %v163 = vsub.s32 0, %v162
    %v164 = vrot.slane %v159, %v163
    %v170 = vunpack.c.l.b16 %v155
    %v171 = vunpack.c.l.b16 %v156
    %v172 = vunpack.c.l.b16 %v157
    %v173 = vunpack.c.l.b16 %v158
    %v174 = vpack.c.b16 %v171, %v170
    %v175 = vpack.c.b16 %v173, %v172
    %vm178 = vcmask 261120
    %v180 = vsel %vm178, %v154, 0
    %182 = vmatprep.subr.bf16.mxu0 0
    %183 = vmatpush1.bf16.msra.mxu0 0
    %184 = vmatprep.subr.bf16.mxu0 0
    %185 = vmatpush1.bf16.msra.mxu0 0
    %186 = vmatprep.subr.bf16.mxu0 0
    %187 = vmatpush1.bf16.msra.mxu0 0
    %188 = vmatprep.subr.bf16.mxu0 0
    %189 = vmatpush1.bf16.msra.mxu0 0
    %190 = vmatprep.subr.bf16.mxu0 0
    %191 = vmatpush1.bf16.msra.mxu0 0
    %192 = vmatprep.subr.bf16.mxu0 0
    %193 = vmatpush1.bf16.msra.mxu0 0
    %194 = vmatprep.subr.bf16.mxu0 0
    %195 = vmatpush1.bf16.msra.mxu0 %v175
    %196 = vmatprep.subr.bf16.mxu0 0
    %197 = vmatpush1.bf16.msra.mxu0 %v174
    %198 = vmatprep.subr.bf16.mxu0 0
    %199 = vmatpush2.bf16.msra.mxu0 0
    %200 = vmatprep.subr.bf16.mxu0 0
    %201 = vmatpush2.bf16.msra.mxu0 0
    %202 = vmatprep.subr.bf16.mxu0 0
    %203 = vmatpush2.bf16.msra.mxu0 0
    %204 = vmatprep.subr.bf16.mxu0 0
    %205 = vmatpush2.bf16.msra.mxu0 0
    %206 = vmatprep.subr.bf16.mxu0 0
    %207 = vmatpush2.bf16.msra.mxu0 0
    %208 = vmatprep.subr.bf16.mxu0 0
    %209 = vmatpush2.bf16.msra.mxu0 0
    %210 = vmatprep.subr.bf16.mxu0 0
    %211 = vmatpush2.bf16.msra.mxu0 0
    %212 = vmatprep.subr.bf16.mxu0 0
    %213 = vmatpush2.bf16.msra.mxu0 0
    %214 = vmatprep.mubr.bf16.mxu0 0
    %215 = vmatmul.mubr.bf16.gmra.mxu0 %v180
    %v216 = vpop.f32.mrf.mxu0
    %v217 = vadd.f32 %v164, %v216
    %v218 = vpop.f32.mrf.mxu0
    %v219 = vpop.f32.mrf.mxu0
    %v220 = vpop.f32.mrf.mxu0
    %221 = vdwg.mxu0
    %v222 = vmax.f32 %v217, 0.0
    %v223 = vpack.c.bf16 %v222, %v222
    %v224 = vld [vmem:[#allocation8] sm:$0xf]
    %v225 = vld [vmem:[#allocation8 + $0x4] sm:$0xf]
    %v226 = vld [vmem:[#allocation8 + $0x8] sm:$0xf]
    %v227 = vld [vmem:[#allocation8 + $0xc] sm:$0xf]
    %v228 = vld [vmem:[%s6] sm:$0x1]
    %v230 = vlaneseq
    %v231 = vshrl.u32 %v230, 7
    %v232 = vsub.s32 0, %v231
    %v233 = vrot.slane %v228, %v232
    %v239 = vunpack.c.l.b16 %v224
    %v240 = vunpack.c.l.b16 %v225
    %v241 = vunpack.c.l.b16 %v226
    %v242 = vunpack.c.l.b16 %v227
    %v243 = vpack.c.b16 %v240, %v239
    %v244 = vpack.c.b16 %v242, %v241
    %v248 = vsel %vm178, %v223, 0
    %250 = vmatprep.subr.bf16.mxu0 0
    %251 = vmatpush1.bf16.msra.mxu0 0
    %252 = vmatprep.subr.bf16.mxu0 0
    %253 = vmatpush1.bf16.msra.mxu0 0
    %254 = vmatprep.subr.bf16.mxu0 0
    %255 = vmatpush1.bf16.msra.mxu0 0
    %256 = vmatprep.subr.bf16.mxu0 0
    %257 = vmatpush1.bf16.msra.mxu0 0
    %258 = vmatprep.subr.bf16.mxu0 0
    %259 = vmatpush1.bf16.msra.mxu0 0
    %260 = vmatprep.subr.bf16.mxu0 0
    %261 = vmatpush1.bf16.msra.mxu0 0
    %262 = vmatprep.subr.bf16.mxu0 0
    %263 = vmatpush1.bf16.msra.mxu0 %v244
    %264 = vmatprep.subr.bf16.mxu0 0
    %265 = vmatpush1.bf16.msra.mxu0 %v243
    %266 = vmatprep.subr.bf16.mxu0 0
    %267 = vmatpush2.bf16.msra.mxu0 0
    %268 = vmatprep.subr.bf16.mxu0 0
    %269 = vmatpush2.bf16.msra.mxu0 0
    %270 = vmatprep.subr.bf16.mxu0 0
    %271 = vmatpush2.bf16.msra.mxu0 0
    %272 = vmatprep.subr.bf16.mxu0 0
    %273 = vmatpush2.bf16.msra.mxu0 0
    %274 = vmatprep.subr.bf16.mxu0 0
    %275 = vmatpush2.bf16.msra.mxu0 0
    %276 = vmatprep.subr.bf16.mxu0 0
    %277 = vmatpush2.bf16.msra.mxu0 0
    %278 = vmatprep.subr.bf16.mxu0 0
    %279 = vmatpush2.bf16.msra.mxu0 0
    %280 = vmatprep.subr.bf16.mxu0 0
    %281 = vmatpush2.bf16.msra.mxu0 0
    %282 = vmatprep.mubr.bf16.mxu0 0
    %283 = vmatmul.mubr.bf16.gmra.mxu0 %v248
    %v284 = vpop.f32.mrf.mxu0
    %v285 = vadd.f32 %v233, %v284
    %v286 = vpop.f32.mrf.mxu0
    %v287 = vpop.f32.mrf.mxu0
    %v288 = vpop.f32.mrf.mxu0
    %289 = vdwg.mxu0
    %v290 = vld [vmem:[%s7] sm:$0x1]
    %v292 = vlaneseq
    %v293 = vshrl.u32 %v292, 7
    %v294 = vsub.s32 0, %v293
    %v295 = vrot.slane %v290, %v294
    %v297 = vmax.f32 %v285, %v295
    %v298 = vld [vmem:[%s8] sm:$0x1]
    %v300 = vlaneseq
    %v301 = vshrl.u32 %v300, 7
    %v302 = vsub.s32 0, %v301
    %v303 = vrot.slane %v298, %v302
    %v305 = vmin.f32 %v297, %v303
    %306 = vst [vmem:[#allocation10] sm:$0xff] %v305
    // Predicated region
    $region54: #{tpu_custom_call.1} parent=1 // pred_check
      _
    $region55: #{tpu_custom_call.1} parent=1 // pred_check_branch
      %308 = sbr.rel (0) target = $region57
    $region56: #{tpu_custom_call.1} parent=1 // pred_region
      %s310 = ssub.s32 128, 128
      %311 = vsyncadd [#allocation4], %s310
      %s313 = sshll.u32 [#allocation10], 4
      %s314 = int_to_ptr.vmem [resolvable:$true] %s313
      %316 = dma.vmem_to_hbm [thread:$0]  %s314, 128, %s9, [#allocation4]
    $region57: #{tpu_custom_call.1} parent=1 // pred_fallthru
      _
    // Predicated region
    $region58: #{tpu_custom_call.1} parent=1 // pred_check
      _
    $region59: #{tpu_custom_call.1} parent=1 // pred_check_branch
      %318 = sbr.rel (0) target = $region61
    $region60: #{tpu_custom_call.1} parent=1 // pred_region
      %319 = dma.done [#allocation4], 128
    $region61: #{tpu_custom_call.1} parent=1 // pred_fallthru
      _
    %320 = vsyncpa [#allocation3], 1
    %321 = vsyncpa [#allocation6], 1
    %322 = vsyncpa [#allocation9], 1
    %323 = vsyncpa [#allocation4], 1

</llo_original>
